<compile_context>
chip_gen: v7x
topology: tpu7x:2x2x1
jax: 0.10.0
libtpu: 0.0.40
codegen_flags: <defaults>
</compile_context>

<pallas_src>
import jax
import jax.numpy as jnp
import numpy as np
from jax import lax
from jax.experimental import pallas as pl
from jax.experimental.pallas import tpu as pltpu

LANE = 128


# ----------------------------------------------------------------------------
# Kernel factory.
# Block shapes seen by the kernel:
#   x_ref, t_ref : (TB, C, S_TILE, 128)  native dtype (f32/bf16), cast in VMEM
#   m_ref        : (TB, 1, S_TILE, 128)  int8 mask (only when with_mask)
#   numer_ref    : (TB, 1, 128)          f32 per-lane partial (accumulator)
#   cnt_ref      : (TB, 1, 128)          f32 valid-position count (mask only)
# ----------------------------------------------------------------------------
def _make_soft_ce_kernel(C, s_tile, p_valid, needs_pad_mask, with_mask):
    def kernel(*refs):
        if with_mask:
            x_ref, t_ref, m_ref, numer_ref, cnt_ref = refs
        else:
            x_ref, t_ref, numer_ref = refs

        x = x_ref[...]
        t = t_ref[...]
        # Per-class dense (TB, S_TILE, 128) f32 slices: full vreg occupancy even
        # for small C; class reductions become unrolled VALU maximum/add.
        xc = [x[:, c].astype(jnp.float32) for c in range(C)]
        tc = [t[:, c].astype(jnp.float32) for c in range(C)]

        xmax = xc[0]
        tmax = tc[0]
        for c in range(1, C):
            xmax = jnp.maximum(xmax, xc[c])
            tmax = jnp.maximum(tmax, tc[c])

        xs0 = xc[0] - xmax
        z = jnp.exp(xs0)                      # logits partition function
        et0 = jnp.exp(tc[0] - tmax)
        st = et0                              # labels partition function
        num = et0 * xs0                       # sum_c exp(t_c - tmax) * (x_c - xmax)
        for c in range(1, C):
            xs_c = xc[c] - xmax
            z = z + jnp.exp(xs_c)
            et_c = jnp.exp(tc[c] - tmax)
            st = st + et_c
            num = num + et_c * xs_c

        # sum_c softmax(t)_c * log_softmax(x)_c  ==  num / st - log(z)
        # (one divide + one log per position; no (C, P) logp materialization).
        col = num / st - jnp.log(z)           # (TB, S_TILE, 128)

        if with_mask:
            m = m_ref[...][:, 0].astype(jnp.float32)      # (TB, S_TILE, 128)
            col = col * m
        elif needs_pad_mask:
            s_idx = lax.broadcasted_iota(jnp.int32, col.shape, 1)
            lane = lax.broadcasted_iota(jnp.int32, col.shape, 2)
            pos = (pl.program_id(1) * s_tile + s_idx) * LANE + lane
            col = jnp.where(pos < p_valid, col, 0.0)

        partial = jnp.sum(col, axis=1, keepdims=True)     # (TB, 1, 128)

        # Output block is resident across the (arbitrary) spatial-tile axis:
        # zero it on the first spatial tile, accumulate afterwards.
        @pl.when(pl.program_id(1) == 0)
        def _init():
            numer_ref[...] = jnp.zeros_like(numer_ref)
            if with_mask:
                cnt_ref[...] = jnp.zeros_like(cnt_ref)

        numer_ref[...] += partial
        if with_mask:
            cnt_ref[...] += jnp.sum(m, axis=1, keepdims=True)

    return kernel


def _choose_tiles(B, C, S, itemsize):
    # Tiny problem: a single grid step over the whole (B, C, S, 128) array.
    if B * C * S * LANE * 4 <= (2 << 20):
        return B, S
    # General case: one batch element per step; size the spatial tile so the
    # pipelined input working set (2 inputs x 2 buffers) stays around ~6 MiB,
    # inside every chip's default scoped VMEM (16 MiB v5e, 32 MiB v6e/v7x) with
    # headroom for in-kernel f32 temporaries (v7x has only 64 MiB physical).
    budget = 6 << 20
    per_row = 4 * C * LANE * itemsize          # 2 inputs x 2 buffers per S row
    s_tile = budget // per_row
    s_tile = max(32, min(1024, (s_tile // 32) * 32))   # mult of 32: f32/bf16/int8 safe
    if s_tile >= S:
        return 1, S
    return 1, int(s_tile)


# ----------------------------------------------------------------------------
# Wrapper: matches torch SoftCrossEntropy.forward(logits, labels, valid_mask)
# ----------------------------------------------------------------------------
def soft_cross_entropy(logits, labels, valid_mask=None, *, block_b=None, block_s=None):
    B, C, H, W = logits.shape
    P = H * W
    S = -(-P // LANE)                              # rows of 128 lanes
    itemsize = jnp.dtype(logits.dtype).itemsize

    tb, ts = _choose_tiles(B, C, S, itemsize)
    if block_b is not None:
        tb = int(block_b)
    if block_s is not None:
        ts = int(block_s)
    assert B % tb == 0, "block_b must divide the batch"
    ts = min(ts, S)
    s_pad = S if ts == S else (-(-S // ts) * ts)
    pad = s_pad * LANE - P

    # Contiguous reshape only (NCHW -> (B, C, S, 128)); keep native dtype.
    lg = logits.reshape(B, C, P)
    lb = labels.reshape(B, C, P)
    if pad:
        lg = jnp.pad(lg, ((0, 0), (0, 0), (0, pad)))
        lb = jnp.pad(lb, ((0, 0), (0, 0), (0, pad)))
    lg = lg.reshape(B, C, s_pad, LANE)
    lb = lb.reshape(B, C, s_pad, LANE)

    grid = (B // tb, s_pad // ts)
    x_spec = pl.BlockSpec((tb, C, ts, LANE), lambda b, s: (b, 0, s, 0))
    out_spec = pl.BlockSpec((tb, 1, LANE), lambda b, s: (b, 0, 0))
    out_sds = jax.ShapeDtypeStruct((B, 1, LANE), jnp.float32)
    cparams = pltpu.CompilerParams(dimension_semantics=("parallel", "arbitrary"))

    if valid_mask is None:
        # Specialized path: no mask stream, no count output.
        kernel = _make_soft_ce_kernel(C, ts, P, pad != 0, with_mask=False)
        numer = pl.pallas_call(
            kernel,
            grid=grid,
            in_specs=[x_spec, x_spec],
            out_specs=out_spec,
            out_shape=out_sds,
            compiler_params=cparams,
        )(lg, lb)
        # torch.mean over every element of log_softmax(logits,1)*softmax(labels,1)
        return jnp.sum(numer) / (B * C * P)

    # Masked path: int8 mask (4x less HBM traffic than f32); padded tail = 0.
    m = valid_mask.reshape(B, 1, P).astype(jnp.int8)
    if pad:
        m = jnp.pad(m, ((0, 0), (0, 0), (0, pad)))
    m = m.reshape(B, 1, s_pad, LANE)
    m_spec = pl.BlockSpec((tb, 1, ts, LANE), lambda b, s: (b, 0, s, 0))

    kernel = _make_soft_ce_kernel(C, ts, P, False, with_mask=True)
    numer, cnt = pl.pallas_call(
        kernel,
        grid=grid,
        in_specs=[x_spec, x_spec, m_spec],
        out_specs=(out_spec, out_spec),
        out_shape=(out_sds, out_sds),
        compiler_params=cparams,
    )(lg, lb, m)

    numer_b = jnp.sum(numer, axis=(1, 2))          # (B,)
    cnt_b = jnp.sum(cnt, axis=(1, 2))              # (B,) = #valid positions
    # NOTE: a sample whose mask is all-False gives cnt_b == 0 -> NaN, matching
    # torch.mean over an empty selection.
    return -jnp.sum(numer_b / (C * cnt_b)) / B


# ----------------------------------------------------------------------------
# References for verification
# ----------------------------------------------------------------------------
def reference_no_mask(logits, labels):
    logp = jax.nn.log_softmax(logits, axis=1)
    q = jax.nn.softmax(labels, axis=1)
    return jnp.mean(logp * q)


def _np_log_softmax(x, axis):
    x = x - x.max(axis=axis, keepdims=True)
    return x - np.log(np.exp(x).sum(axis=axis, keepdims=True))


def _np_softmax(x, axis):
    e = np.exp(x - x.max(axis=axis, keepdims=True))
    return e / e.sum(axis=axis, keepdims=True)


def reference_masked(logits, labels, mask):
    logits = np.asarray(logits).astype(np.float64)
    labels = np.asarray(labels).astype(np.float64)
    mask = np.asarray(mask).astype(bool)
    B, C = logits.shape[:2]
    loss = 0.0
    for b in range(B):
        msk = mask[b].reshape(-1)
        lg = logits[b].reshape(C, -1)[:, msk]
        lb = labels[b].reshape(C, -1)[:, msk]
        loss -= np.mean(_np_log_softmax(lg, 0) * _np_softmax(lb, 0))
    return loss / B


if __name__ == "__main__":
    key = jax.random.PRNGKey(0)
    k1, k2, k3, k4 = jax.random.split(key, 4)

    # Small shapes consistent with the segmentation module: (B=2, C=4, 16, 16).
    logits = jax.random.normal(k1, (2, 4, 16, 16), jnp.float32)
    labels = jax.random.normal(k2, (2, 4, 16, 16), jnp.float32)

    fn = jax.jit(soft_cross_entropy)

    # --- branch 1: valid_mask is None ---
    out = jax.block_until_ready(fn(logits, labels))
    ref = jax.block_until_ready(reference_no_mask(logits, labels))
    np.testing.assert_allclose(np.asarray(out), np.asarray(ref), rtol=1e-4, atol=1e-6)

    # --- branch 2: per-sample valid_mask ---
    mask = jax.random.bernoulli(k3, 0.7, (2, 16, 16))
    mask = mask.at[:, 0, 0].set(True)          # at least one valid position
    out_m = jax.block_until_ready(fn(logits, labels, mask))
    ref_m = reference_masked(logits, labels, mask)
    np.testing.assert_allclose(np.asarray(out_m), np.asarray(ref_m), rtol=1e-4, atol=1e-6)

    # --- branch 3: bf16 inputs + spatial size not a multiple of 128
    #     (exercises native-dtype path and the in-kernel iota pad mask) ---
    lg_b = jax.random.normal(k1, (2, 4, 10, 10), jnp.float32).astype(jnp.bfloat16)
    lb_b = jax.random.normal(k2, (2, 4, 10, 10), jnp.float32).astype(jnp.bfloat16)
    out_b = jax.block_until_ready(fn(lg_b, lb_b))
    ref_b = reference_no_mask(lg_b.astype(jnp.float32), lb_b.astype(jnp.float32))
    np.testing.assert_allclose(np.asarray(out_b), np.asarray(ref_b), rtol=1e-3, atol=1e-5)

    # --- branch 4: force the multi-tile accumulator path (grid=(2,4)) ---
    lg2 = jax.random.normal(k1, (2, 4, 128, 128), jnp.float32)
    lb2 = jax.random.normal(k2, (2, 4, 128, 128), jnp.float32)
    mask2 = jax.random.bernoulli(k4, 0.6, (2, 128, 128)).at[:, 0, 0].set(True)
    fn_tiled = jax.jit(lambda a, b, m: soft_cross_entropy(a, b, m, block_b=1, block_s=32))
    out_t = jax.block_until_ready(fn_tiled(lg2, lb2, mask2))
    ref_t = reference_masked(lg2, lb2, mask2)
    np.testing.assert_allclose(np.asarray(out_t), np.asarray(ref_t), rtol=1e-4, atol=1e-6)

    print("KERNEL_OK")
</pallas_src>

<mosaic_0001>
module attributes {stable_mosaic.version = 11 : i64} {
  func.func @kernel(%arg0: i32, %arg1: i32, %arg2: memref<2x4x2x128xf32, #tpu.memory_space<vmem>>, %arg3: memref<2x4x2x128xf32, #tpu.memory_space<vmem>>, %arg4: memref<2x1x128xf32, #tpu.memory_space<vmem>>) attributes {dimension_semantics = [#tpu.dimension_semantics<parallel>, #tpu.dimension_semantics<arbitrary>], iteration_bounds = array<i64: 1, 1>, scalar_prefetch = 0 : i64, scratch_operands = 0 : i64, tpu.core_type = #tpu.core_type<tc>, window_params = [{transform_indices = @transform_0, window_bounds = array<i64: 2, 4, 2, 128>}, {transform_indices = @transform_1, window_bounds = array<i64: 2, 4, 2, 128>}, {transform_indices = @transform_2, window_bounds = array<i64: 2, 1, 128>}]} {
    %c0 = arith.constant 0 : index
    %c0_0 = arith.constant 0 : index
    %c0_1 = arith.constant 0 : index
    %c0_2 = arith.constant 0 : index
    %0 = vector.load %arg2[%c0, %c0_0, %c0_1, %c0_2] : memref<2x4x2x128xf32, #tpu.memory_space<vmem>>, vector<2x4x2x128xf32>
    %c0_3 = arith.constant 0 : index
    %c0_4 = arith.constant 0 : index
    %c0_5 = arith.constant 0 : index
    %c0_6 = arith.constant 0 : index
    %1 = vector.load %arg3[%c0_3, %c0_4, %c0_5, %c0_6] : memref<2x4x2x128xf32, #tpu.memory_space<vmem>>, vector<2x4x2x128xf32>
    %2 = vector.extract_strided_slice %0 {offsets = [0, 0, 0, 0], sizes = [2, 1, 2, 128], strides = [1, 1, 1, 1]} : vector<2x4x2x128xf32> to vector<2x1x2x128xf32>
    %3 = vector.shape_cast %2 : vector<2x1x2x128xf32> to vector<2x2x128xf32>
    %4 = vector.extract_strided_slice %0 {offsets = [0, 1, 0, 0], sizes = [2, 1, 2, 128], strides = [1, 1, 1, 1]} : vector<2x4x2x128xf32> to vector<2x1x2x128xf32>
    %5 = vector.shape_cast %4 : vector<2x1x2x128xf32> to vector<2x2x128xf32>
    %6 = vector.extract_strided_slice %0 {offsets = [0, 2, 0, 0], sizes = [2, 1, 2, 128], strides = [1, 1, 1, 1]} : vector<2x4x2x128xf32> to vector<2x1x2x128xf32>
    %7 = vector.shape_cast %6 : vector<2x1x2x128xf32> to vector<2x2x128xf32>
    %8 = vector.extract_strided_slice %0 {offsets = [0, 3, 0, 0], sizes = [2, 1, 2, 128], strides = [1, 1, 1, 1]} : vector<2x4x2x128xf32> to vector<2x1x2x128xf32>
    %9 = vector.shape_cast %8 : vector<2x1x2x128xf32> to vector<2x2x128xf32>
    %10 = vector.extract_strided_slice %1 {offsets = [0, 0, 0, 0], sizes = [2, 1, 2, 128], strides = [1, 1, 1, 1]} : vector<2x4x2x128xf32> to vector<2x1x2x128xf32>
    %11 = vector.shape_cast %10 : vector<2x1x2x128xf32> to vector<2x2x128xf32>
    %12 = vector.extract_strided_slice %1 {offsets = [0, 1, 0, 0], sizes = [2, 1, 2, 128], strides = [1, 1, 1, 1]} : vector<2x4x2x128xf32> to vector<2x1x2x128xf32>
    %13 = vector.shape_cast %12 : vector<2x1x2x128xf32> to vector<2x2x128xf32>
    %14 = vector.extract_strided_slice %1 {offsets = [0, 2, 0, 0], sizes = [2, 1, 2, 128], strides = [1, 1, 1, 1]} : vector<2x4x2x128xf32> to vector<2x1x2x128xf32>
    %15 = vector.shape_cast %14 : vector<2x1x2x128xf32> to vector<2x2x128xf32>
    %16 = vector.extract_strided_slice %1 {offsets = [0, 3, 0, 0], sizes = [2, 1, 2, 128], strides = [1, 1, 1, 1]} : vector<2x4x2x128xf32> to vector<2x1x2x128xf32>
    %17 = vector.shape_cast %16 : vector<2x1x2x128xf32> to vector<2x2x128xf32>
    %18 = arith.maximumf %3, %5 : vector<2x2x128xf32>
    %19 = arith.maximumf %11, %13 : vector<2x2x128xf32>
    %20 = arith.maximumf %18, %7 : vector<2x2x128xf32>
    %21 = arith.maximumf %19, %15 : vector<2x2x128xf32>
    %22 = arith.maximumf %20, %9 : vector<2x2x128xf32>
    %23 = arith.maximumf %21, %17 : vector<2x2x128xf32>
    %24 = arith.subf %3, %22 : vector<2x2x128xf32>
    %25 = math.exp %24 : vector<2x2x128xf32>
    %26 = arith.subf %11, %23 : vector<2x2x128xf32>
    %27 = math.exp %26 : vector<2x2x128xf32>
    %28 = arith.mulf %27, %24 : vector<2x2x128xf32>
    %29 = arith.subf %5, %22 : vector<2x2x128xf32>
    %30 = math.exp %29 : vector<2x2x128xf32>
    %31 = arith.addf %25, %30 : vector<2x2x128xf32>
    %32 = arith.subf %13, %23 : vector<2x2x128xf32>
    %33 = math.exp %32 : vector<2x2x128xf32>
    %34 = arith.addf %27, %33 : vector<2x2x128xf32>
    %35 = arith.mulf %33, %29 : vector<2x2x128xf32>
    %36 = arith.addf %28, %35 : vector<2x2x128xf32>
    %37 = arith.subf %7, %22 : vector<2x2x128xf32>
    %38 = math.exp %37 : vector<2x2x128xf32>
    %39 = arith.addf %31, %38 : vector<2x2x128xf32>
    %40 = arith.subf %15, %23 : vector<2x2x128xf32>
    %41 = math.exp %40 : vector<2x2x128xf32>
    %42 = arith.addf %34, %41 : vector<2x2x128xf32>
    %43 = arith.mulf %41, %37 : vector<2x2x128xf32>
    %44 = arith.addf %36, %43 : vector<2x2x128xf32>
    %45 = arith.subf %9, %22 : vector<2x2x128xf32>
    %46 = math.exp %45 : vector<2x2x128xf32>
    %47 = arith.addf %39, %46 : vector<2x2x128xf32>
    %48 = arith.subf %17, %23 : vector<2x2x128xf32>
    %49 = math.exp %48 : vector<2x2x128xf32>
    %50 = arith.addf %42, %49 : vector<2x2x128xf32>
    %51 = arith.mulf %49, %45 : vector<2x2x128xf32>
    %52 = arith.addf %44, %51 : vector<2x2x128xf32>
    %53 = arith.divf %52, %50 : vector<2x2x128xf32>
    %54 = math.log %47 : vector<2x2x128xf32>
    %55 = arith.subf %53, %54 : vector<2x2x128xf32>
    %cst = arith.constant dense<0.000000e+00> : vector<2x128xf32>
    %56 = vector.multi_reduction <add>, %55, %cst [1] : vector<2x2x128xf32> to vector<2x128xf32>
    %57 = vector.shape_cast %56 : vector<2x128xf32> to vector<2x1x128xf32>
    %c0_i32 = arith.constant 0 : i32
    %58 = arith.cmpi eq, %arg1, %c0_i32 : i32
    %59 = arith.extui %58 : i1 to i32
    %c0_i32_7 = arith.constant 0 : i32
    %60 = arith.cmpi ne, %59, %c0_i32_7 : i32
    scf.if %60 {
      %cst_14 = arith.constant 0.000000e+00 : f32
      %64 = vector.broadcast %cst_14 : f32 to vector<2x1x128xf32>
      %c0_15 = arith.constant 0 : index
      %c0_16 = arith.constant 0 : index
      %c0_17 = arith.constant 0 : index
      %65 = vector.load %arg4[%c0_15, %c0_16, %c0_17] : memref<2x1x128xf32, #tpu.memory_space<vmem>>, vector<2x1x128xf32>
      tpu.vector_store %arg4[%c0_15, %c0_16, %c0_17], %64 {strides = array<i32>} : memref<2x1x128xf32, #tpu.memory_space<vmem>>, vector<2x1x128xf32>,
    } else {
    }
    %c0_8 = arith.constant 0 : index
    %c0_9 = arith.constant 0 : index
    %c0_10 = arith.constant 0 : index
    %61 = vector.load %arg4[%c0_8, %c0_9, %c0_10] : memref<2x1x128xf32, #tpu.memory_space<vmem>>, vector<2x1x128xf32>
    %62 = arith.addf %61, %57 : vector<2x1x128xf32>
    %c0_11 = arith.constant 0 : index
    %c0_12 = arith.constant 0 : index
    %c0_13 = arith.constant 0 : index
    %63 = vector.load %arg4[%c0_11, %c0_12, %c0_13] : memref<2x1x128xf32, #tpu.memory_space<vmem>>, vector<2x1x128xf32>
    tpu.vector_store %arg4[%c0_11, %c0_12, %c0_13], %62 {strides = array<i32>} : memref<2x1x128xf32, #tpu.memory_space<vmem>>, vector<2x1x128xf32>,
    return
  }
  func.func @transform_0(%arg0: i32, %arg1: i32) -> (i32, i32, i32, i32) {
    %c0_i32 = arith.constant 0 : i32
    %c0_i32_0 = arith.constant 0 : i32
    %c0_i32_1 = arith.constant 0 : i32
    return %arg0, %c0_i32, %arg1, %c0_i32_0 : i32, i32, i32, i32
  }
  func.func @transform_1(%arg0: i32, %arg1: i32) -> (i32, i32, i32, i32) {
    %c0_i32 = arith.constant 0 : i32
    %c0_i32_0 = arith.constant 0 : i32
    %c0_i32_1 = arith.constant 0 : i32
    return %arg0, %c0_i32, %arg1, %c0_i32_0 : i32, i32, i32, i32
  }
  func.func @transform_2(%arg0: i32, %arg1: i32) -> (i32, i32, i32) {
    %c0_i32 = arith.constant 0 : i32
    %c0_i32_0 = arith.constant 0 : i32
    %c0_i32_1 = arith.constant 0 : i32
    return %arg0, %c0_i32, %c0_i32_0 : i32, i32, i32
  }
}

</mosaic_0001>

<llo_original>
// kernel: soft_cross_entropy.1
$region0: #{soft_cross_entropy.1}
  #allocation0 [shape = 'u32[]', space=smem, size = 0x4, offset = 0x4, fixed_abs, tag = 'smem constant byte address 0x4 - core index']
  #allocation1 [shape = 'u32[144,128]{1,0:T(1,128)}', space=vmem, size = 0x12000, scoped, tag = 'internal scratch']
  %s0 = inlined_call_operand.vmem [shape: f32[2,4,2,128], index: 0, kind: input, shape index: {}]
  %s1 = inlined_call_operand.vmem [shape: f32[2,4,2,128], index: 1, kind: input, shape index: {}]
  %s2 = inlined_call_operand.vmem [shape: f32[2,1,128], index: 2, kind: output, shape index: {}]
  %s3 = sld [smem:[#allocation0]]
  $region22: #{soft_cross_entropy.1} parent=0
    _
  %s5 = ssub.s32 1, %s3
  %s6 = scalar_select 0, %s5, %s3
  // Predicated region
  $region2: #{soft_cross_entropy.1} parent=0 // pred_check
    _
  $region3: #{soft_cross_entropy.1} parent=0 // pred_check_branch
    %8 = sbr.rel (0) target = $region5
  $region4: #{soft_cross_entropy.1} parent=0 // pred_region
    _
  $region5: #{soft_cross_entropy.1} parent=0 // pred_fallthru
    _
  // Predicated region
  $region6: #{soft_cross_entropy.1} parent=0 // pred_check
    _
  $region7: #{soft_cross_entropy.1} parent=0 // pred_check_branch
    %10 = sbr.rel (0) target = $region9
  $region8: #{soft_cross_entropy.1} parent=0 // pred_region
    _
  $region9: #{soft_cross_entropy.1} parent=0 // pred_fallthru
    _
  %v11 = vld [vmem:[%s0] sm:$0x3]
  %v12 = vld [vmem:[%s0 + $0x2] sm:$0x3]
  %v13 = vld [vmem:[%s0 + $0x4] sm:$0x3]
  %v14 = vld [vmem:[%s0 + $0x6] sm:$0x3]
  %v15 = vld [vmem:[%s0 + $0x8] sm:$0x3]
  %v16 = vld [vmem:[%s0 + $0xa] sm:$0x3]
  %v17 = vld [vmem:[%s0 + $0xc] sm:$0x3]
  %v18 = vld [vmem:[%s0 + $0xe] sm:$0x3]
  %v19 = vld [vmem:[%s1] sm:$0x3]
  %v20 = vld [vmem:[%s1 + $0x2] sm:$0x3]
  %v21 = vld [vmem:[%s1 + $0x4] sm:$0x3]
  %v22 = vld [vmem:[%s1 + $0x6] sm:$0x3]
  %v23 = vld [vmem:[%s1 + $0x8] sm:$0x3]
  %v24 = vld [vmem:[%s1 + $0xa] sm:$0x3]
  %v25 = vld [vmem:[%s1 + $0xc] sm:$0x3]
  %v26 = vld [vmem:[%s1 + $0xe] sm:$0x3]
  %v27 = vmax.f32 %v11, %v12
  %v28 = vmax.f32 %v15, %v16
  %v29 = vmax.f32 %v19, %v20
  %v30 = vmax.f32 %v23, %v24
  %v31 = vmax.f32 %v27, %v13
  %v32 = vmax.f32 %v28, %v17
  %v33 = vmax.f32 %v29, %v21
  %v34 = vmax.f32 %v30, %v25
  %v35 = vmax.f32 %v31, %v14
  %v36 = vmax.f32 %v32, %v18
  %v37 = vmax.f32 %v33, %v22
  %v38 = vmax.f32 %v34, %v26
  %v39 = vsub.f32 %v11, %v35
  %v40 = vsub.f32 %v15, %v36
  %v41 = vmul.f32 %v39, 1.442695
  %v42 = vpow.pop %v41
  %v43 = vmul.f32 %v40, 1.442695
  %v44 = vpow.pop %v43
  %v45 = vsub.f32 %v19, %v37
  %v46 = vsub.f32 %v23, %v38
  %v47 = vmul.f32 %v45, 1.442695
  %v48 = vpow.pop %v47
  %v49 = vmul.f32 %v46, 1.442695
  %v50 = vpow.pop %v49
  %v51 = vmul.f32 %v48, %v39
  %v52 = vmul.f32 %v50, %v40
  %v53 = vsub.f32 %v12, %v35
  %v54 = vsub.f32 %v16, %v36
  %v55 = vmul.f32 %v53, 1.442695
  %v56 = vpow.pop %v55
  %v57 = vmul.f32 %v54, 1.442695
  %v58 = vpow.pop %v57
  %v59 = vadd.f32 %v42, %v56
  %v60 = vadd.f32 %v44, %v58
  %v61 = vsub.f32 %v20, %v37
  %v62 = vsub.f32 %v24, %v38
  %v63 = vmul.f32 %v61, 1.442695
  %v64 = vpow.pop %v63
  %v65 = vmul.f32 %v62, 1.442695
  %v66 = vpow.pop %v65
  %v67 = vadd.f32 %v48, %v64
  %v68 = vadd.f32 %v50, %v66
  %v69 = vmul.f32 %v64, %v53
  %v70 = vmul.f32 %v66, %v54
  %v71 = vadd.f32 %v51, %v69
  %v72 = vadd.f32 %v52, %v70
  %v73 = vsub.f32 %v13, %v35
  %v74 = vsub.f32 %v17, %v36
  %v75 = vmul.f32 %v73, 1.442695
  %v76 = vpow.pop %v75
  %v77 = vmul.f32 %v74, 1.442695
  %v78 = vpow.pop %v77
  %v79 = vadd.f32 %v59, %v76
  %v80 = vadd.f32 %v60, %v78
  %v81 = vsub.f32 %v21, %v37
  %v82 = vsub.f32 %v25, %v38
  %v83 = vmul.f32 %v81, 1.442695
  %v84 = vpow.pop %v83
  %v85 = vmul.f32 %v82, 1.442695
  %v86 = vpow.pop %v85
  %v87 = vadd.f32 %v67, %v84
  %v88 = vadd.f32 %v68, %v86
  %v89 = vmul.f32 %v84, %v73
  %v90 = vmul.f32 %v86, %v74
  %v91 = vadd.f32 %v71, %v89
  %v92 = vadd.f32 %v72, %v90
  %v93 = vsub.f32 %v14, %v35
  %v94 = vsub.f32 %v18, %v36
  %v95 = vmul.f32 %v93, 1.442695
  %v96 = vpow.pop %v95
  %v97 = vmul.f32 %v94, 1.442695
  %v98 = vpow.pop %v97
  %v99 = vadd.f32 %v79, %v96
  %v100 = vadd.f32 %v80, %v98
  %v101 = vsub.f32 %v22, %v37
  %v102 = vsub.f32 %v26, %v38
  %v103 = vmul.f32 %v101, 1.442695
  %v104 = vpow.pop %v103
  %v105 = vmul.f32 %v102, 1.442695
  %v106 = vpow.pop %v105
  %v107 = vadd.f32 %v87, %v104
  %v108 = vadd.f32 %v88, %v106
  %v109 = vmul.f32 %v104, %v93
  %v110 = vmul.f32 %v106, %v94
  %v111 = vadd.f32 %v91, %v109
  %v112 = vadd.f32 %v92, %v110
  %v113 = vrcp.pop %v107
  %v114 = vmul.f32 %v111, %v113
  %v115 = vrcp.pop %v108
  %v116 = vmul.f32 %v112, %v115
  %v117 = vlog2.pop %v99
  %v118 = vmul.f32 %v117, 0.6931472
  %v119 = vlog2.pop %v100
  %v120 = vmul.f32 %v119, 0.6931472
  %v121 = vsub.f32 %v114, %v118
  %v122 = vsub.f32 %v116, %v120
  %vm123 = vcmask 1041408
  %v124 = vsel %vm123, %v121, 0.0
  %v125 = vrot.slane %v124, 4
  %v126 = vadd.f32 %v124, %v125
  %v127 = vrot.slane %v126, 2
  %v128 = vadd.f32 %v126, %v127
  %v129 = vrot.slane %v128, 1
  %v130 = vadd.f32 %v128, %v129
  %v131 = vsel %vm123, %v122, 0.0
  %v132 = vrot.slane %v131, 4
  %v133 = vadd.f32 %v131, %v132
  %v134 = vrot.slane %v133, 2
  %v135 = vadd.f32 %v133, %v134
  %v136 = vrot.slane %v135, 1
  %v137 = vadd.f32 %v135, %v136
  %p138 = scmp.eq.s32.totalorder 0, 0
  // Predicated region
  $region10: #{soft_cross_entropy.1} parent=0 // pred_check
    %p139 = pneg %p138
  $region11: #{soft_cross_entropy.1} parent=0 // pred_check_branch
    %141 = sbr.rel (%p139) target = $region13
  $region12: #{soft_cross_entropy.1} parent=0 // pred_region
    %142 = vst [vmem:[%s2] sm:$0x1] 0.0
    %143 = vst [vmem:[%s2 + $0x1] sm:$0x1] 0.0
  $region13: #{soft_cross_entropy.1} parent=0 // pred_fallthru
    _
  %v144 = vld [vmem:[%s2] sm:$0x1]
  %v145 = vld [vmem:[%s2 + $0x1] sm:$0x1]
  %v146 = vadd.f32 %v144, %v130
  %v147 = vadd.f32 %v145, %v137
  %148 = vst [vmem:[%s2] sm:$0x1] %v146
  %149 = vst [vmem:[%s2 + $0x1] sm:$0x1] %v147
  // Predicated region
  $region14: #{soft_cross_entropy.1} parent=0 // pred_check
    _
  $region15: #{soft_cross_entropy.1} parent=0 // pred_check_branch
    %151 = sbr.rel (0) target = $region17
  $region16: #{soft_cross_entropy.1} parent=0 // pred_region
    _
  $region17: #{soft_cross_entropy.1} parent=0 // pred_fallthru
    _
  // Predicated region
  $region18: #{soft_cross_entropy.1} parent=0 // pred_check
    _
  $region19: #{soft_cross_entropy.1} parent=0 // pred_check_branch
    %153 = sbr.rel (0) target = $region21
  $region20: #{soft_cross_entropy.1} parent=0 // pred_region
    _
  $region21: #{soft_cross_entropy.1} parent=0 // pred_fallthru
    _

</llo_original>
